<compile_context>
chip_gen: v7x
topology: tpu7x:2x2x1
jax: 0.10.0
libtpu: 0.0.40
codegen_flags: <defaults>
</compile_context>

<pallas_src>
import jax
import jax.numpy as jnp
from jax.experimental import pallas as pl
from jax.experimental.pallas import tpu as pltpu

IN_FEATURES = 10
OUT_FEATURES = 2

PACK = 64                          # original rows folded into one lane-dense row
PACKED_IN = PACK * IN_FEATURES     # 640  (lane-dense: multiple of 128)
PACKED_OUT = PACK * OUT_FEATURES   # 128  (exactly one full lane width)

_TB_PACKED = 512                   # packed-row tile (=32768 orig rows, ~1.5 MiB/step)
_SMALL_ROWS_CUTOFF = 2048          # <= this many packed rows: single un-pipelined block
_VMEM_LIMIT_BYTES = 32 * 1024 * 1024


def linear_kernel(x_ref, w_ref, b_ref, o_ref):
    # x_ref: (TB, 640), w_ref: (640, 128), b_ref: (1, 128), o_ref: (TB, 128)
    acc = jnp.dot(x_ref[...], w_ref[...], preferred_element_type=jnp.float32)
    o_ref[...] = (acc + b_ref[...]).astype(o_ref.dtype)


def prepare_params(weight, bias):
    """One-time parameter prep (hoisted out of the forward path).

    weight: [OUT, IN] (PyTorch nn.Linear layout) -> packed block-diagonal
            w_packed: [640, 128] with w_t = weight.T repeated 64x on the diagonal.
    bias:   [OUT] -> b_packed: [1, 128] (bias tiled 64x).
    Must be rebuilt whenever the underlying weights change.
    """
    w_t = weight.T.astype(jnp.float32)                       # (10, 2)
    eye = jnp.eye(PACK, dtype=jnp.float32)                   # (64, 64)
    # w_packed[p*10 + i, q*2 + o] = (p == q) * w_t[i, o]
    w_packed = jnp.einsum("pq,io->piqo", eye, w_t).reshape(PACKED_IN, PACKED_OUT)
    b_packed = jnp.tile(bias.astype(jnp.float32), (PACK,)).reshape(1, PACKED_OUT)
    # Plain (unpacked) params for the tiny-batch XLA fallback.
    w_t_plain = w_t
    b_plain = bias.astype(jnp.float32).reshape(1, OUT_FEATURES)
    return w_packed, b_packed, w_t_plain, b_plain


@jax.jit
def simple_model_forward(x, w_packed, b_packed, w_t_plain, b_plain):
    """o = x @ W^T + b.  x: [B, 10] f32 -> [B, 2] f32."""
    B = x.shape[0]

    if B < PACK:
        # Tiny batch: a Pallas custom call cannot win here (launch + tiny-DMA
        # fixed cost); let XLA fuse the matmul into the surrounding graph.
        return x @ w_t_plain + b_plain

    # Pad B up to a multiple of PACK (zero rows -> sliced off after the kernel).
    B_pad = pl.cdiv(B, PACK) * PACK
    if B_pad != B:
        x = jnp.pad(x, ((0, B_pad - B), (0, 0)))
    rows = B_pad // PACK
    xp = x.reshape(rows, PACKED_IN)          # free reshape (row-major contiguous)

    if rows <= _SMALL_ROWS_CUTOFF:
        # Single VMEM-resident block, one kernel invocation, no grid/pipeline
        # scaffolding (<= ~6 MiB of VMEM).
        out = pl.pallas_call(
            linear_kernel,
            out_shape=jax.ShapeDtypeStruct((rows, PACKED_OUT), jnp.float32),
            in_specs=[
                pl.BlockSpec(memory_space=pltpu.MemorySpace.VMEM),
                pl.BlockSpec(memory_space=pltpu.MemorySpace.VMEM),
                pl.BlockSpec(memory_space=pltpu.MemorySpace.VMEM),
            ],
            out_specs=pl.BlockSpec(memory_space=pltpu.MemorySpace.VMEM),
            compiler_params=pltpu.CompilerParams(
                vmem_limit_bytes=_VMEM_LIMIT_BYTES),
        )(xp, w_packed, b_packed)
    else:
        # Large batch: tile packed rows (>= 5 grid steps given the cutoff), mark
        # the batch axis "parallel" (megacore / v7x 2-TC sharding).  Weight and
        # bias blocks are grid-invariant and stay resident in VMEM.
        tb = _TB_PACKED
        out = pl.pallas_call(
            linear_kernel,
            out_shape=jax.ShapeDtypeStruct((rows, PACKED_OUT), jnp.float32),
            grid_spec=pltpu.PrefetchScalarGridSpec(
                num_scalar_prefetch=0,
                grid=(pl.cdiv(rows, tb),),
                in_specs=[
                    pl.BlockSpec((tb, PACKED_IN), lambda i: (i, 0)),
                    pl.BlockSpec((PACKED_IN, PACKED_OUT), lambda i: (0, 0)),
                    pl.BlockSpec((1, PACKED_OUT), lambda i: (0, 0)),
                ],
                out_specs=pl.BlockSpec((tb, PACKED_OUT), lambda i: (i, 0)),
            ),
            compiler_params=pltpu.CompilerParams(
                dimension_semantics=("parallel",),
                vmem_limit_bytes=_VMEM_LIMIT_BYTES),
        )(xp, w_packed, b_packed)

    y = out.reshape(B_pad, OUT_FEATURES)     # free reshape back to [B_pad, 2]
    if B_pad != B:
        y = y[:B]
    return y


if __name__ == "__main__":
    # Deterministic parameters + input (mirrors nn.Linear(10, 2) shapes).
    key = jax.random.PRNGKey(0)
    wk, bk, xk = jax.random.split(key, 3)
    bound = 1.0 / (IN_FEATURES ** 0.5)
    weight = jax.random.uniform(
        wk, (OUT_FEATURES, IN_FEATURES), jnp.float32, -bound, bound)
    bias = jax.random.uniform(
        bk, (OUT_FEATURES,), jnp.float32, -bound, bound)

    # Small batch, multiple of PACK so no padding is needed (kernel path runs).
    B = 128
    x = jax.random.normal(xk, (B, IN_FEATURES), jnp.float32)

    # Param prep is done once, outside the forward path.
    params = prepare_params(weight, bias)

    out = simple_model_forward(x, *params)
    out = jax.block_until_ready(out)

    # Reference: the exact PyTorch forward in plain JAX.
    ref = x @ weight.T + bias
    assert out.shape == (B, OUT_FEATURES)
    assert jnp.allclose(out, ref, atol=1e-5, rtol=1e-5)

    print("KERNEL_OK")
</pallas_src>

<mosaic_0001>
module attributes {stable_mosaic.version = 11 : i64} {
  func.func @linear_kernel(%arg0: memref<2x640xf32, #tpu.memory_space<vmem>>, %arg1: memref<640x128xf32, #tpu.memory_space<vmem>>, %arg2: memref<1x128xf32, #tpu.memory_space<vmem>>, %arg3: memref<2x128xf32, #tpu.memory_space<vmem>>) attributes {dimension_semantics = [], scalar_prefetch = 0 : i64, scratch_operands = 0 : i64, tpu.core_type = #tpu.core_type<tc>} {
    %c0 = arith.constant 0 : index
    %c0_0 = arith.constant 0 : index
    %0 = vector.load %arg0[%c0, %c0_0] : memref<2x640xf32, #tpu.memory_space<vmem>>, vector<2x640xf32>
    %c0_1 = arith.constant 0 : index
    %c0_2 = arith.constant 0 : index
    %1 = vector.load %arg1[%c0_1, %c0_2] : memref<640x128xf32, #tpu.memory_space<vmem>>, vector<640x128xf32>
    %cst = arith.constant dense<0.000000e+00> : vector<2x128xf32>
    %2 = tpu.matmul %0, %1, %cst {dimension_numbers = #tpu.dot_dimension_numbers<[1], [0], [0], [1], [0, 0, 1, 1], [], []>} : vector<2x640xf32>, vector<640x128xf32>, vector<2x128xf32> -> vector<2x128xf32>
    %c0_3 = arith.constant 0 : index
    %c0_4 = arith.constant 0 : index
    %3 = vector.load %arg2[%c0_3, %c0_4] : memref<1x128xf32, #tpu.memory_space<vmem>>, vector<1x128xf32>
    %4 = vector.broadcast %3 : vector<1x128xf32> to vector<2x128xf32>
    %5 = arith.addf %2, %4 : vector<2x128xf32>
    %c0_5 = arith.constant 0 : index
    %c0_6 = arith.constant 0 : index
    %6 = vector.load %arg3[%c0_5, %c0_6] : memref<2x128xf32, #tpu.memory_space<vmem>>, vector<2x128xf32>
    tpu.vector_store %arg3[%c0_5, %c0_6], %5 {strides = array<i32>} : memref<2x128xf32, #tpu.memory_space<vmem>>, vector<2x128xf32>,
    return
  }
}

</mosaic_0001>

<llo_original>
// kernel: simple_model_forward.1
$region0: #{simple_model_forward.1}
  #allocation0 [shape = 'u32[]', space=smem, size = 0x4, offset = 0x4, fixed_abs, tag = 'smem constant byte address 0x4 - core index']
  #allocation1 [shape = 'u32[144,128]{1,0:T(1,128)}', space=vmem, size = 0x12000, scoped, tag = 'internal scratch']
  %s0 = inlined_call_operand.vmem [shape: f32[2,640], index: 0, kind: input, shape index: {}]
  %s1 = inlined_call_operand.hbm [shape: f32[640,128], index: 1, kind: input, shape index: {}]
  %s2 = inlined_call_operand.vmem [shape: f32[1,128], index: 2, kind: input, shape index: {}]
  %s3 = inlined_call_operand.vmem [shape: f32[2,128], index: 3, kind: output, shape index: {}]
  %s4 = sld [smem:[#allocation0]]
  $region26: #{simple_model_forward.1} parent=0
    _
  %s6 = ssub.s32 1, %s4
  %s7 = scalar_select 0, %s6, %s4
  $region1: #{simple_model_forward.1} parent=0
    #allocation2 [shape = 'u8[327680]{0}', space=vmem, size = 0x50000, scoped, tag = 'input window, operand 1, single buffered']
    #allocation3 [shape = 's32[1]{0}', space=sflag, size = 0x4, scoped, tag = 'scoped memory for simple_model_forward.1']
    %8 = vsyncpa [#allocation3], 0
    // Predicated region
    $region2: #{simple_model_forward.1} parent=1 // pred_check
      _
    $region3: #{simple_model_forward.1} parent=1 // pred_check_branch
      %10 = sbr.rel (0) target = $region5
    $region4: #{simple_model_forward.1} parent=1 // pred_region
      _
    $region5: #{simple_model_forward.1} parent=1 // pred_fallthru
      _
    // Predicated region
    $region6: #{simple_model_forward.1} parent=1 // pred_check
      _
    $region7: #{simple_model_forward.1} parent=1 // pred_check_branch
      %12 = sbr.rel (0) target = $region9
    $region8: #{simple_model_forward.1} parent=1 // pred_region
      %s14 = ssub.s32 10240, 10240
      %15 = vsyncadd [#allocation3], %s14
      %s16 = sshll.u32 [#allocation2], 4
      %s17 = int_to_ptr.vmem [resolvable:$true] %s16
      %22 = dma.hbm_to_vmem [thread:$0]  %s1, 10240, %s17, [#allocation3], 128, 128, 8
    $region9: #{simple_model_forward.1} parent=1 // pred_fallthru
      _
    // Predicated region
    $region10: #{simple_model_forward.1} parent=1 // pred_check
      _
    $region11: #{simple_model_forward.1} parent=1 // pred_check_branch
      %24 = sbr.rel (0) target = $region13
    $region12: #{simple_model_forward.1} parent=1 // pred_region
      _
    $region13: #{simple_model_forward.1} parent=1 // pred_fallthru
      _
    // Predicated region
    $region14: #{simple_model_forward.1} parent=1 // pred_check
      _
    $region15: #{simple_model_forward.1} parent=1 // pred_check_branch
      %26 = sbr.rel (0) target = $region17
    $region16: #{simple_model_forward.1} parent=1 // pred_region
      %27 = dma.done [#allocation3], 10240
    $region17: #{simple_model_forward.1} parent=1 // pred_fallthru
      _
    %v28 = vld [vmem:[%s0] sm:$0xff]
    %v29 = vld [vmem:[%s0 + $0x8] sm:$0x3]
    %v30 = vld [vmem:[#allocation2] sm:$0xff]
    %v31 = vld [vmem:[#allocation2 + $0x8] sm:$0xff]
    %v32 = vld [vmem:[#allocation2 + $0x10] sm:$0xff]
    %v33 = vld [vmem:[#allocation2 + $0x18] sm:$0xff]
    %v34 = vld [vmem:[#allocation2 + $0x20] sm:$0xff]
    %v35 = vld [vmem:[#allocation2 + $0x28] sm:$0xff]
    %v36 = vld [vmem:[#allocation2 + $0x30] sm:$0xff]
    %v37 = vld [vmem:[#allocation2 + $0x38] sm:$0xff]
    %v38 = vld [vmem:[#allocation2 + $0x40] sm:$0xff]
    %v39 = vld [vmem:[#allocation2 + $0x48] sm:$0xff]
    %v40 = vld [vmem:[#allocation2 + $0x50] sm:$0xff]
    %v41 = vld [vmem:[#allocation2 + $0x58] sm:$0xff]
    %v42 = vld [vmem:[#allocation2 + $0x60] sm:$0xff]
    %v43 = vld [vmem:[#allocation2 + $0x68] sm:$0xff]
    %v44 = vld [vmem:[#allocation2 + $0x70] sm:$0xff]
    %v45 = vld [vmem:[#allocation2 + $0x78] sm:$0xff]
    %v46 = vld [vmem:[#allocation2 + $0x80] sm:$0xff]
    %v47 = vld [vmem:[#allocation2 + $0x88] sm:$0xff]
    %v48 = vld [vmem:[#allocation2 + $0x90] sm:$0xff]
    %v49 = vld [vmem:[#allocation2 + $0x98] sm:$0xff]
    %v50 = vld [vmem:[#allocation2 + $0xa0] sm:$0xff]
    %v51 = vld [vmem:[#allocation2 + $0xa8] sm:$0xff]
    %v52 = vld [vmem:[#allocation2 + $0xb0] sm:$0xff]
    %v53 = vld [vmem:[#allocation2 + $0xb8] sm:$0xff]
    %v54 = vld [vmem:[#allocation2 + $0xc0] sm:$0xff]
    %v55 = vld [vmem:[#allocation2 + $0xc8] sm:$0xff]
    %v56 = vld [vmem:[#allocation2 + $0xd0] sm:$0xff]
    %v57 = vld [vmem:[#allocation2 + $0xd8] sm:$0xff]
    %v58 = vld [vmem:[#allocation2 + $0xe0] sm:$0xff]
    %v59 = vld [vmem:[#allocation2 + $0xe8] sm:$0xff]
    %v60 = vld [vmem:[#allocation2 + $0xf0] sm:$0xff]
    %v61 = vld [vmem:[#allocation2 + $0xf8] sm:$0xff]
    %v62 = vld [vmem:[#allocation2 + $0x100] sm:$0xff]
    %v63 = vld [vmem:[#allocation2 + $0x108] sm:$0xff]
    %v64 = vld [vmem:[#allocation2 + $0x110] sm:$0xff]
    %v65 = vld [vmem:[#allocation2 + $0x118] sm:$0xff]
    %v66 = vld [vmem:[#allocation2 + $0x120] sm:$0xff]
    %v67 = vld [vmem:[#allocation2 + $0x128] sm:$0xff]
    %v68 = vld [vmem:[#allocation2 + $0x130] sm:$0xff]
    %v69 = vld [vmem:[#allocation2 + $0x138] sm:$0xff]
    %v70 = vld [vmem:[#allocation2 + $0x140] sm:$0xff]
    %v71 = vld [vmem:[#allocation2 + $0x148] sm:$0xff]
    %v72 = vld [vmem:[#allocation2 + $0x150] sm:$0xff]
    %v73 = vld [vmem:[#allocation2 + $0x158] sm:$0xff]
    %v74 = vld [vmem:[#allocation2 + $0x160] sm:$0xff]
    %v75 = vld [vmem:[#allocation2 + $0x168] sm:$0xff]
    %v76 = vld [vmem:[#allocation2 + $0x170] sm:$0xff]
    %v77 = vld [vmem:[#allocation2 + $0x178] sm:$0xff]
    %v78 = vld [vmem:[#allocation2 + $0x180] sm:$0xff]
    %v79 = vld [vmem:[#allocation2 + $0x188] sm:$0xff]
    %v80 = vld [vmem:[#allocation2 + $0x190] sm:$0xff]
    %v81 = vld [vmem:[#allocation2 + $0x198] sm:$0xff]
    %v82 = vld [vmem:[#allocation2 + $0x1a0] sm:$0xff]
    %v83 = vld [vmem:[#allocation2 + $0x1a8] sm:$0xff]
    %v84 = vld [vmem:[#allocation2 + $0x1b0] sm:$0xff]
    %v85 = vld [vmem:[#allocation2 + $0x1b8] sm:$0xff]
    %v86 = vld [vmem:[#allocation2 + $0x1c0] sm:$0xff]
    %v87 = vld [vmem:[#allocation2 + $0x1c8] sm:$0xff]
    %v88 = vld [vmem:[#allocation2 + $0x1d0] sm:$0xff]
    %v89 = vld [vmem:[#allocation2 + $0x1d8] sm:$0xff]
    %v90 = vld [vmem:[#allocation2 + $0x1e0] sm:$0xff]
    %v91 = vld [vmem:[#allocation2 + $0x1e8] sm:$0xff]
    %v92 = vld [vmem:[#allocation2 + $0x1f0] sm:$0xff]
    %v93 = vld [vmem:[#allocation2 + $0x1f8] sm:$0xff]
    %v94 = vld [vmem:[#allocation2 + $0x200] sm:$0xff]
    %v95 = vld [vmem:[#allocation2 + $0x208] sm:$0xff]
    %v96 = vld [vmem:[#allocation2 + $0x210] sm:$0xff]
    %v97 = vld [vmem:[#allocation2 + $0x218] sm:$0xff]
    %v98 = vld [vmem:[#allocation2 + $0x220] sm:$0xff]
    %v99 = vld [vmem:[#allocation2 + $0x228] sm:$0xff]
    %v100 = vld [vmem:[#allocation2 + $0x230] sm:$0xff]
    %v101 = vld [vmem:[#allocation2 + $0x238] sm:$0xff]
    %v102 = vld [vmem:[#allocation2 + $0x240] sm:$0xff]
    %v103 = vld [vmem:[#allocation2 + $0x248] sm:$0xff]
    %v104 = vld [vmem:[#allocation2 + $0x250] sm:$0xff]
    %v105 = vld [vmem:[#allocation2 + $0x258] sm:$0xff]
    %v106 = vld [vmem:[#allocation2 + $0x260] sm:$0xff]
    %v107 = vld [vmem:[#allocation2 + $0x268] sm:$0xff]
    %v108 = vld [vmem:[#allocation2 + $0x270] sm:$0xff]
    %v109 = vld [vmem:[#allocation2 + $0x278] sm:$0xff]
    %v110 = vld [vmem:[%s2] sm:$0x1]
    %v112 = vlaneseq
    %v113 = vshrl.u32 %v112, 7
    %v114 = vsub.s32 0, %v113
    %v115 = vrot.slane %v110, %v114
    %v119 = vcombine.high %v28, %v28
    %v121 = vunpack.c.l.s4 1983009808
    %v122 = vunpack.c.0.s8 %v121
    %v123 = vlaneseq
    %v124 = vshrl.u32 %v123, 7
    %v125 = vsub.s32 %v122, %v124
    %v126 = vrot.slane %v28, %v125
    %v128 = vunpack.c.l.s4 1983009808
    %v129 = vunpack.c.0.s8 %v128
    %v130 = vlaneseq
    %v131 = vshrl.u32 %v130, 7
    %v132 = vsub.s32 %v129, %v131
    %v133 = vrot.slane %v119, %v132
    %v134 = vcombine.high %v126, %v126
    %v135 = vcombine.high %v133, %v133
    %v137 = vunpack.c.l.s4 1983009808
    %v138 = vunpack.c.0.s8 %v137
    %v139 = vlaneseq
    %v140 = vshrl.u32 %v139, 7
    %v141 = vsub.s32 %v138, %v140
    %v142 = vrot.slane %v29, %v141
    %148 = vmatprep.subr.mxu0 0.0
    %149 = vmatpush1.msra.mxu0 %v30
    %150 = vmatprep.subr.mxu0 0.0
    %151 = vmatpush1.msra.mxu0 %v31
    %152 = vmatprep.subr.mxu0 0.0
    %153 = vmatpush1.msra.mxu0 %v32
    %154 = vmatprep.subr.mxu0 0.0
    %155 = vmatpush1.msra.mxu0 %v33
    %156 = vmatprep.subr.mxu0 0.0
    %157 = vmatpush1.msra.mxu0 %v34
    %158 = vmatprep.subr.mxu0 0.0
    %159 = vmatpush1.msra.mxu0 %v35
    %160 = vmatprep.subr.mxu0 0.0
    %161 = vmatpush1.msra.mxu0 %v36
    %162 = vmatprep.subr.mxu0 0.0
    %163 = vmatpush1.msra.mxu0 %v37
    %164 = vmatprep.subr.mxu0 0.0
    %165 = vmatpush1.msra.mxu0 %v38
    %166 = vmatprep.subr.mxu0 0.0
    %167 = vmatpush1.msra.mxu0 %v39
    %168 = vmatprep.subr.mxu0 0.0
    %169 = vmatpush1.msra.mxu0 %v40
    %170 = vmatprep.subr.mxu0 0.0
    %171 = vmatpush1.msra.mxu0 %v41
    %172 = vmatprep.subr.mxu0 0.0
    %173 = vmatpush1.msra.mxu0 %v42
    %174 = vmatprep.subr.mxu0 0.0
    %175 = vmatpush1.msra.mxu0 %v43
    %176 = vmatprep.subr.mxu0 0.0
    %177 = vmatpush1.msra.mxu0 %v44
    %178 = vmatprep.subr.mxu0 0.0
    %179 = vmatpush1.msra.mxu0 %v45
    %180 = vmatprep.subr.mxu0 0.0
    %181 = vmatpush1.msra.mxu0 %v46
    %182 = vmatprep.subr.mxu0 0.0
    %183 = vmatpush1.msra.mxu0 %v47
    %184 = vmatprep.subr.mxu0 0.0
    %185 = vmatpush1.msra.mxu0 %v48
    %186 = vmatprep.subr.mxu0 0.0
    %187 = vmatpush1.msra.mxu0 %v49
    %188 = vmatprep.subr.mxu0 0.0
    %189 = vmatpush1.msra.mxu0 %v50
    %190 = vmatprep.subr.mxu0 0.0
    %191 = vmatpush1.msra.mxu0 %v51
    %192 = vmatprep.subr.mxu0 0.0
    %193 = vmatpush1.msra.mxu0 %v52
    %194 = vmatprep.subr.mxu0 0.0
    %195 = vmatpush1.msra.mxu0 %v53
    %196 = vmatprep.subr.mxu0 0.0
    %197 = vmatpush1.msra.mxu0 %v54
    %198 = vmatprep.subr.mxu0 0.0
    %199 = vmatpush1.msra.mxu0 %v55
    %200 = vmatprep.subr.mxu0 0.0
    %201 = vmatpush1.msra.mxu0 %v56
    %202 = vmatprep.subr.mxu0 0.0
    %203 = vmatpush1.msra.mxu0 %v57
    %204 = vmatprep.subr.mxu0 0.0
    %205 = vmatpush1.msra.mxu0 %v58
    %206 = vmatprep.subr.mxu0 0.0
    %207 = vmatpush1.msra.mxu0 %v59
    %208 = vmatprep.subr.mxu0 0.0
    %209 = vmatpush1.msra.mxu0 %v60
    %210 = vmatprep.subr.mxu0 0.0
    %211 = vmatpush1.msra.mxu0 %v61
    %212 = vmatprep.mubr.f32.mxu0 %v134
    %213 = vmatmul.mubr.f32.gmra.mrb[0].mxu0 %v126
    %v214 = vpop.f32.mrb[0].mxu0
    %v215 = vadd.f32 %v115, %v214
    %v216 = vpop.f32.mrb[0].mxu0
    %217 = vdwg.mxu0
    %218 = vmatprep.subr.mxu0 0.0
    %219 = vmatpush1.msra.mxu0 %v62
    %220 = vmatprep.subr.mxu0 0.0
    %221 = vmatpush1.msra.mxu0 %v63
    %222 = vmatprep.subr.mxu0 0.0
    %223 = vmatpush1.msra.mxu0 %v64
    %224 = vmatprep.subr.mxu0 0.0
    %225 = vmatpush1.msra.mxu0 %v65
    %226 = vmatprep.subr.mxu0 0.0
    %227 = vmatpush1.msra.mxu0 %v66
    %228 = vmatprep.subr.mxu0 0.0
    %229 = vmatpush1.msra.mxu0 %v67
    %230 = vmatprep.subr.mxu0 0.0
    %231 = vmatpush1.msra.mxu0 %v68
    %232 = vmatprep.subr.mxu0 0.0
    %233 = vmatpush1.msra.mxu0 %v69
    %234 = vmatprep.subr.mxu0 0.0
    %235 = vmatpush1.msra.mxu0 %v70
    %236 = vmatprep.subr.mxu0 0.0
    %237 = vmatpush1.msra.mxu0 %v71
    %238 = vmatprep.subr.mxu0 0.0
    %239 = vmatpush1.msra.mxu0 %v72
    %240 = vmatprep.subr.mxu0 0.0
    %241 = vmatpush1.msra.mxu0 %v73
    %242 = vmatprep.subr.mxu0 0.0
    %243 = vmatpush1.msra.mxu0 %v74
    %244 = vmatprep.subr.mxu0 0.0
    %245 = vmatpush1.msra.mxu0 %v75
    %246 = vmatprep.subr.mxu0 0.0
    %247 = vmatpush1.msra.mxu0 %v76
    %248 = vmatprep.subr.mxu0 0.0
    %249 = vmatpush1.msra.mxu0 %v77
    %250 = vmatprep.subr.mxu0 0.0
    %251 = vmatpush1.msra.mxu0 %v78
    %252 = vmatprep.subr.mxu0 0.0
    %253 = vmatpush1.msra.mxu0 %v79
    %254 = vmatprep.subr.mxu0 0.0
    %255 = vmatpush1.msra.mxu0 %v80
    %256 = vmatprep.subr.mxu0 0.0
    %257 = vmatpush1.msra.mxu0 %v81
    %258 = vmatprep.subr.mxu0 0.0
    %259 = vmatpush1.msra.mxu0 %v82
    %260 = vmatprep.subr.mxu0 0.0
    %261 = vmatpush1.msra.mxu0 %v83
    %262 = vmatprep.subr.mxu0 0.0
    %263 = vmatpush1.msra.mxu0 %v84
    %264 = vmatprep.subr.mxu0 0.0
    %265 = vmatpush1.msra.mxu0 %v85
    %266 = vmatprep.subr.mxu0 0.0
    %267 = vmatpush1.msra.mxu0 %v86
    %268 = vmatprep.subr.mxu0 0.0
    %269 = vmatpush1.msra.mxu0 %v87
    %270 = vmatprep.subr.mxu0 0.0
    %271 = vmatpush1.msra.mxu0 %v88
    %272 = vmatprep.subr.mxu0 0.0
    %273 = vmatpush1.msra.mxu0 %v89
    %274 = vmatprep.subr.mxu0 0.0
    %275 = vmatpush1.msra.mxu0 %v90
    %276 = vmatprep.subr.mxu0 0.0
    %277 = vmatpush1.msra.mxu0 %v91
    %278 = vmatprep.subr.mxu0 0.0
    %279 = vmatpush1.msra.mxu0 %v92
    %280 = vmatprep.subr.mxu0 0.0
    %281 = vmatpush1.msra.mxu0 %v93
    %282 = vmatprep.mubr.f32.mxu0 %v135
    %283 = vmatmul.mubr.f32.gmra.mrb[0].mxu0 %v133
    %v284 = vpop.f32.mrb[0].mxu0
    %v285 = vadd.f32 %v215, %v284
    %v286 = vpop.f32.mrb[0].mxu0
    %287 = vdwg.mxu0
    %288 = vmatprep.subr.mxu0 0.0
    %289 = vmatpush1.msra.mxu0 %v94
    %290 = vmatprep.subr.mxu0 0.0
    %291 = vmatpush1.msra.mxu0 %v95
    %292 = vmatprep.subr.mxu0 0.0
    %293 = vmatpush1.msra.mxu0 %v96
    %294 = vmatprep.subr.mxu0 0.0
    %295 = vmatpush1.msra.mxu0 %v97
    %296 = vmatprep.subr.mxu0 0.0
    %297 = vmatpush1.msra.mxu0 %v98
    %298 = vmatprep.subr.mxu0 0.0
    %299 = vmatpush1.msra.mxu0 %v99
    %300 = vmatprep.subr.mxu0 0.0
    %301 = vmatpush1.msra.mxu0 %v100
    %302 = vmatprep.subr.mxu0 0.0
    %303 = vmatpush1.msra.mxu0 %v101
    %304 = vmatprep.subr.mxu0 0.0
    %305 = vmatpush1.msra.mxu0 %v102
    %306 = vmatprep.subr.mxu0 0.0
    %307 = vmatpush1.msra.mxu0 %v103
    %308 = vmatprep.subr.mxu0 0.0
    %309 = vmatpush1.msra.mxu0 %v104
    %310 = vmatprep.subr.mxu0 0.0
    %311 = vmatpush1.msra.mxu0 %v105
    %312 = vmatprep.subr.mxu0 0.0
    %313 = vmatpush1.msra.mxu0 %v106
    %314 = vmatprep.subr.mxu0 0.0
    %315 = vmatpush1.msra.mxu0 %v107
    %316 = vmatprep.subr.mxu0 0.0
    %317 = vmatpush1.msra.mxu0 %v108
    %318 = vmatprep.subr.mxu0 0.0
    %319 = vmatpush1.msra.mxu0 %v109
    %320 = vmatprep.subr.mxu0 0.0
    %321 = vmatpush1.msra.mxu0 0.0
    %322 = vmatprep.subr.mxu0 0.0
    %323 = vmatpush1.msra.mxu0 0.0
    %324 = vmatprep.subr.mxu0 0.0
    %325 = vmatpush1.msra.mxu0 0.0
    %326 = vmatprep.subr.mxu0 0.0
    %327 = vmatpush1.msra.mxu0 0.0
    %328 = vmatprep.subr.mxu0 0.0
    %329 = vmatpush1.msra.mxu0 0.0
    %330 = vmatprep.subr.mxu0 0.0
    %331 = vmatpush1.msra.mxu0 0.0
    %332 = vmatprep.subr.mxu0 0.0
    %333 = vmatpush1.msra.mxu0 0.0
    %334 = vmatprep.subr.mxu0 0.0
    %335 = vmatpush1.msra.mxu0 0.0
    %336 = vmatprep.subr.mxu0 0.0
    %337 = vmatpush1.msra.mxu0 0.0
    %338 = vmatprep.subr.mxu0 0.0
    %339 = vmatpush1.msra.mxu0 0.0
    %340 = vmatprep.subr.mxu0 0.0
    %341 = vmatpush1.msra.mxu0 0.0
    %342 = vmatprep.subr.mxu0 0.0
    %343 = vmatpush1.msra.mxu0 0.0
    %344 = vmatprep.subr.mxu0 0.0
    %345 = vmatpush1.msra.mxu0 0.0
    %346 = vmatprep.subr.mxu0 0.0
    %347 = vmatpush1.msra.mxu0 0.0
    %348 = vmatprep.subr.mxu0 0.0
    %349 = vmatpush1.msra.mxu0 0.0
    %350 = vmatprep.subr.mxu0 0.0
    %351 = vmatpush1.msra.mxu0 0.0
    %352 = vmatprep.mubr.f32.mxu0 0.0
    %353 = vmatmul.mubr.f32.gmra.mrb[0].mxu0 %v142
    %v354 = vpop.f32.mrb[0].mxu0
    %v355 = vadd.f32 %v285, %v354
    %v356 = vpop.f32.mrb[0].mxu0
    %357 = vdwg.mxu0
    %358 = vst [vmem:[%s3] sm:$0x3] %v355
    // Predicated region
    $region18: #{simple_model_forward.1} parent=1 // pred_check
      _
    $region19: #{simple_model_forward.1} parent=1 // pred_check_branch
      %360 = sbr.rel (0) target = $region21
    $region20: #{simple_model_forward.1} parent=1 // pred_region
      _
    $region21: #{simple_model_forward.1} parent=1 // pred_fallthru
      _
    // Predicated region
    $region22: #{simple_model_forward.1} parent=1 // pred_check
      _
    $region23: #{simple_model_forward.1} parent=1 // pred_check_branch
      %362 = sbr.rel (0) target = $region25
    $region24: #{simple_model_forward.1} parent=1 // pred_region
      _
    $region25: #{simple_model_forward.1} parent=1 // pred_fallthru
      _
    %363 = vsyncpa [#allocation3], 1

</llo_original>
